<compile_context>
chip_gen: v6e
topology: v6e:2x2x1
jax: 0.10.0
libtpu: 0.0.40
codegen_flags: <defaults>
</compile_context>

<pallas_src>
import functools

import jax
import jax.numpy as jnp
from jax.experimental import pallas as pl
from jax.experimental.pallas import tpu as pltpu


NEG_SLOPE = 0.01  # default slope of nn.LeakyReLU()
_LANE = 128


def _round_up(x, m):
    return ((x + m - 1) // m) * m


def _cdiv(a, b):
    return -(-a // b)


def _sublane_min(itemsize):
    # Minimum second-to-last tile dim: 8 for 32-bit, 16 for 16-bit, 32 for 8-bit.
    return {4: 8, 2: 16, 1: 32}.get(itemsize, 8)


def _default_vmem_budget_bytes():
    """~75% of physical VMEM; falls back to the smallest generation (v7x, 64 MiB/TC)."""
    phys = 64 << 20
    try:
        info = pltpu.get_tpu_info()
        cap = getattr(info, "vmem_capacity_bytes", None)
        if cap:
            phys = int(cap)
    except Exception:
        pass
    return (phys * 3) // 4


def _vmem_footprint(tm, tn, tk, x_bytes, w_bytes, out_bytes, use_acc):
    return (2 * tm * tk * x_bytes                 # x tile, double-buffered
            + 2 * tk * tn * w_bytes               # w tile, double-buffered
            + 2 * tm * tn * out_bytes             # out tile, double-buffered
            + (tm * tn * 4 if use_acc else 0)     # f32 accumulator scratch
            + 2 * tn * 4)                         # bias tile


def _shrink_tiles(tm, tn, tk, sub_min):
    """Halve one tile dim: deep K first, then the larger of tm/tn, then K again."""
    def halve_sub(v):
        return max(sub_min, _round_up(max(v // 2, 1), sub_min))

    def halve_lane(v):
        return max(_LANE, _round_up(max(v // 2, 1), _LANE))

    if tk > 512 and halve_lane(tk) < tk:
        return tm, tn, halve_lane(tk)
    if tm >= tn and halve_sub(tm) < tm:
        return halve_sub(tm), tn, tk
    if tn > _LANE and halve_lane(tn) < tn:
        return tm, halve_lane(tn), tk
    if halve_sub(tm) < tm:
        return halve_sub(tm), tn, tk
    if tk > _LANE and halve_lane(tk) < tk:
        return tm, tn, halve_lane(tk)
    return tm, tn, tk


def _choose_tiles(M, K, N, x_bytes, w_bytes, out_bytes, budget,
                  tm_req, tn_req, tk_req, sub_min):
    # M tile: full M when it fits (no alignment needed when tm == full dim),
    # otherwise a sublane-aligned tile <= the request (never larger than M).
    if M <= max(tm_req, sub_min):
        tm = M
    else:
        tm = max(sub_min, (tm_req // sub_min) * sub_min)
    # N tile: full N when N <= 128 (lane-partial but unavoidable); otherwise a
    # 128-multiple tile no larger than N (lane-dense stores, block <= array dim).
    if N <= _LANE:
        tn = N
    else:
        tn = min(max(_LANE, (tn_req // _LANE) * _LANE), (N // _LANE) * _LANE)
    # K tile: single K pass when it fits the request (no K padding, no accumulator
    # revisits, W streamed once per output block); otherwise a 128-multiple tile.
    if K <= tk_req:
        tk = K
    else:
        tk = max(_LANE, (tk_req // _LANE) * _LANE)

    # Shrink until the double-buffered footprint fits the VMEM budget.
    for _ in range(64):
        use_acc = (tk < K) and (out_bytes != 4)
        if _vmem_footprint(tm, tn, tk, x_bytes, w_bytes, out_bytes, use_acc) <= budget:
            break
        new = _shrink_tiles(tm, tn, tk, sub_min)
        if new == (tm, tn, tk):
            break
        tm, tn, tk = new

    # v7x has 2 TensorCores: make sure the parallel (M, N) portion of the grid has
    # at least two blocks so both cores get work (no-op on 1-TC v5e/v6e).
    if _cdiv(M, tm) * _cdiv(N, tn) < 2:
        if M >= 2 * sub_min:
            tm = _round_up(_cdiv(M, 2), sub_min)
        elif N > _LANE and tn > _LANE:
            tn = max(_LANE, _round_up(_cdiv(N, 2), _LANE))
    return tm, tn, tk


def _ffn_kernel_single(x_ref, w_ref, b_ref, o_ref, *, neg_slope, mxu_dtype):
    """Whole K in one block: dot + bias + LeakyReLU fused, no accumulator."""
    x = x_ref[...]
    w = w_ref[...]
    if mxu_dtype is not None:
        if x.dtype != mxu_dtype:
            x = x.astype(mxu_dtype)
        if w.dtype != mxu_dtype:
            w = w.astype(mxu_dtype)
    y = jnp.dot(x, w, preferred_element_type=jnp.float32)
    y = y + b_ref[...].astype(jnp.float32)
    y = jnp.where(y >= 0, y, neg_slope * y)
    o_ref[...] = y.astype(o_ref.dtype)


def _ffn_kernel_multi(x_ref, w_ref, b_ref, o_ref, *scratch, neg_slope, mxu_dtype):
    """K is tiled (innermost grid axis). f32 outputs accumulate directly in o_ref;
    other output dtypes use an f32 VMEM scratch accumulator."""
    acc_ref = scratch[0] if scratch else o_ref
    k = pl.program_id(2)

    x = x_ref[...]
    w = w_ref[...]
    if mxu_dtype is not None:
        if x.dtype != mxu_dtype:
            x = x.astype(mxu_dtype)
        if w.dtype != mxu_dtype:
            w = w.astype(mxu_dtype)
    partial = jnp.dot(x, w, preferred_element_type=jnp.float32)

    @pl.when(k == 0)
    def _():
        acc_ref[...] = partial          # no zero-fill + read-add on the first K step

    @pl.when(k > 0)
    def _():
        acc_ref[...] += partial

    @pl.when(k == pl.num_programs(2) - 1)
    def _():
        y = acc_ref[...] + b_ref[...].astype(jnp.float32)
        y = jnp.where(y >= 0, y, neg_slope * y)
        o_ref[...] = y.astype(o_ref.dtype)


def ffn_pallas(x2d, w, b, *, tm=512, tn=512, tk=2048,
               neg_slope=NEG_SLOPE, mxu_dtype=None, vmem_budget_bytes=None):
    """x2d: (M, K), w: (K, N), b: (N,). Returns (M, N) in x2d.dtype.

    mxu_dtype: optional MXU feed dtype (e.g. jnp.bfloat16). Operands are cast inside
    the kernel (no extra wrapper HBM pass); for the full bandwidth saving, store `w`
    (and ideally the activations) in that dtype once at init.
    """
    M, K = x2d.shape
    Kw, N = w.shape
    assert K == Kw, (K, Kw)
    assert b.shape == (N,), b.shape
    out_dtype = x2d.dtype

    x_bytes = jnp.dtype(x2d.dtype).itemsize
    w_bytes = jnp.dtype(w.dtype).itemsize
    out_bytes = jnp.dtype(out_dtype).itemsize
    sub_min = _sublane_min(x_bytes)

    if vmem_budget_bytes is None:
        vmem_budget_bytes = _default_vmem_budget_bytes()

    tm_e, tn_e, tk_e = _choose_tiles(M, K, N, x_bytes, w_bytes, out_bytes,
                                     vmem_budget_bytes, tm, tn, tk, sub_min)
    gm, gn, gk = _cdiv(M, tm_e), _cdiv(N, tn_e), _cdiv(K, tk_e)

    # Only K is zero-padded (when tiled): OOB-K garbage would otherwise be accumulated
    # into real outputs. Partial M/N edge blocks need no padding — Pallas clips the
    # write-back of the output block, so garbage rows/cols never reach HBM.
    Kp = gk * tk_e
    if Kp != K:
        x2d = jnp.pad(x2d, ((0, 0), (0, Kp - K)))
        w = jnp.pad(w, ((0, Kp - K), (0, 0)))
    b2d = b.reshape(1, N).astype(jnp.float32)

    use_acc = (gk > 1) and (out_bytes != 4)
    scratch_shapes = [pltpu.VMEM((tm_e, tn_e), jnp.float32)] if use_acc else []

    if gk == 1:
        kernel = functools.partial(_ffn_kernel_single,
                                   neg_slope=neg_slope, mxu_dtype=mxu_dtype)
    else:
        kernel = functools.partial(_ffn_kernel_multi,
                                   neg_slope=neg_slope, mxu_dtype=mxu_dtype)

    cost = pl.CostEstimate(
        flops=2 * M * N * Kp,
        transcendentals=0,
        bytes_accessed=int(M * Kp * x_bytes * gn       # x re-streamed per N tile
                           + Kp * N * w_bytes * gm     # w re-streamed per M tile
                           + M * N * out_bytes
                           + N * 4 * gm),
    )

    out = pl.pallas_call(
        kernel,
        out_shape=jax.ShapeDtypeStruct((M, N), out_dtype),
        grid_spec=pltpu.PrefetchScalarGridSpec(
            num_scalar_prefetch=0,
            grid=(gm, gn, gk),
            in_specs=[
                pl.BlockSpec((tm_e, tk_e), lambda i, j, k: (i, k)),
                pl.BlockSpec((tk_e, tn_e), lambda i, j, k: (k, j)),
                pl.BlockSpec((1, tn_e), lambda i, j, k: (0, j)),
            ],
            out_specs=pl.BlockSpec((tm_e, tn_e), lambda i, j, k: (i, j)),
            scratch_shapes=scratch_shapes,
        ),
        compiler_params=pltpu.CompilerParams(
            dimension_semantics=("parallel", "parallel", "arbitrary"),
            vmem_limit_bytes=int(vmem_budget_bytes) + (8 << 20),
        ),
        cost_estimate=cost,
    )(x2d, w, b2d)
    return out


def ffn_forward(x, w, b, out_features, **kwargs):
    """Mirrors FFN.forward: flattens leading dims for rank>2 inputs."""
    if x.ndim > 2:
        y = ffn_pallas(x.reshape(-1, x.shape[-1]), w, b, **kwargs)
        # Original module views back to (x.shape[0], x.shape[1], out_features); for the
        # supported rank-3 inputs this is identical to restoring all leading dims.
        return y.reshape(x.shape[:-1] + (out_features,))
    return ffn_pallas(x, w, b, **kwargs)


def orthogonal_weight(key, out_features, in_features, dtype=jnp.float32):
    """Deterministic (semi-)orthogonal init matching nn.init.orthogonal_ semantics.
    Returns the PyTorch-convention weight of shape (out_features, in_features)."""
    rows, cols = out_features, in_features
    flat = jax.random.normal(key, (rows, cols), dtype=jnp.float32)
    if rows < cols:
        flat = flat.T
    q, r = jnp.linalg.qr(flat)
    d = jnp.sign(jnp.diagonal(r))
    q = q * d[None, :]
    if rows < cols:
        q = q.T
    return q.astype(dtype)


if __name__ == "__main__":
    key = jax.random.PRNGKey(0)
    k_x, k_w, k_x2, k_w2, k_b2 = jax.random.split(key, 5)

    # ---- Case 1: module-shaped small input (B=2, S=8, 32 -> 32), exact f32 path. ----
    B, S = 2, 8
    in_features, out_features = 32, 32
    w_pt = orthogonal_weight(k_w, out_features, in_features)   # (out, in) PyTorch layout
    w = w_pt.T                                                  # (in, out) for the kernel
    b = jnp.zeros((out_features,), jnp.float32)
    x = jax.random.normal(k_x, (B, S, in_features), jnp.float32)

    out = jax.block_until_ready(ffn_forward(x, w, b, out_features))
    ref = jnp.dot(x.reshape(-1, in_features), w,
                  precision=jax.lax.Precision.HIGHEST) + b
    ref = jnp.where(ref >= 0, ref, NEG_SLOPE * ref).reshape(B, S, out_features)
    assert out.shape == (B, S, out_features)
    assert jnp.allclose(out, ref, atol=1e-5, rtol=1e-5)

    # ---- Case 2: irregular M/N (partial edge blocks) + tiled K (zero-pad K path). ----
    M2, K2, N2 = 100, 320, 200
    x2 = jax.random.normal(k_x2, (M2, K2), jnp.float32)
    w2 = jax.random.normal(k_w2, (K2, N2), jnp.float32) * 0.05
    b2 = jax.random.normal(k_b2, (N2,), jnp.float32)
    out2 = jax.block_until_ready(ffn_pallas(x2, w2, b2, tm=64, tn=128, tk=128))
    ref2 = jnp.dot(x2, w2, precision=jax.lax.Precision.HIGHEST) + b2
    ref2 = jnp.where(ref2 >= 0, ref2, NEG_SLOPE * ref2)
    assert out2.shape == (M2, N2)
    assert jnp.allclose(out2, ref2, atol=1e-3, rtol=1e-3)

    # ---- Case 3: bf16 MXU feed (W stored in bf16, x cast inside the kernel). ----
    out3 = jax.block_until_ready(
        ffn_pallas(x2, w2.astype(jnp.bfloat16), b2, mxu_dtype=jnp.bfloat16))
    assert jnp.allclose(out3, ref2, atol=5e-2, rtol=5e-2)

    print("KERNEL_OK")
</pallas_src>

<mosaic_0001>
module attributes {stable_mosaic.version = 11 : i64} {
  func.func @_ffn_kernel_single(%arg0: i32, %arg1: i32, %arg2: i32, %arg3: memref<8x32xf32, #tpu.memory_space<vmem>>, %arg4: memref<32x32xf32, #tpu.memory_space<vmem>>, %arg5: memref<1x32xf32, #tpu.memory_space<vmem>>, %arg6: memref<8x32xf32, #tpu.memory_space<vmem>>) attributes {dimension_semantics = [#tpu.dimension_semantics<parallel>, #tpu.dimension_semantics<parallel>, #tpu.dimension_semantics<arbitrary>], iteration_bounds = array<i64: 2, 1, 1>, scalar_prefetch = 0 : i64, scratch_operands = 0 : i64, tpu.core_type = #tpu.core_type<tc>, window_params = [{transform_indices = @transform_0, window_bounds = array<i64: 8, 32>}, {transform_indices = @transform_1, window_bounds = array<i64: 32, 32>}, {transform_indices = @transform_2, window_bounds = array<i64: 1, 32>}, {transform_indices = @transform_3, window_bounds = array<i64: 8, 32>}]} {
    %c0 = arith.constant 0 : index
    %c0_0 = arith.constant 0 : index
    %0 = vector.load %arg3[%c0, %c0_0] : memref<8x32xf32, #tpu.memory_space<vmem>>, vector<8x32xf32>
    %c0_1 = arith.constant 0 : index
    %c0_2 = arith.constant 0 : index
    %1 = vector.load %arg4[%c0_1, %c0_2] : memref<32x32xf32, #tpu.memory_space<vmem>>, vector<32x32xf32>
    %cst = arith.constant dense<0.000000e+00> : vector<8x32xf32>
    %2 = tpu.matmul %0, %1, %cst {dimension_numbers = #tpu.dot_dimension_numbers<[1], [0], [0], [1], [0, 0, 1, 1], [], []>} : vector<8x32xf32>, vector<32x32xf32>, vector<8x32xf32> -> vector<8x32xf32>
    %c0_3 = arith.constant 0 : index
    %c0_4 = arith.constant 0 : index
    %3 = vector.load %arg5[%c0_3, %c0_4] : memref<1x32xf32, #tpu.memory_space<vmem>>, vector<1x32xf32>
    %4 = vector.broadcast %3 : vector<1x32xf32> to vector<8x32xf32>
    %5 = arith.addf %2, %4 : vector<8x32xf32>
    %cst_5 = arith.constant 0.000000e+00 : f32
    %6 = vector.broadcast %cst_5 : f32 to vector<8x32xf32>
    %7 = arith.cmpf oge, %5, %6 : vector<8x32xf32>
    %cst_6 = arith.constant 0.00999999977 : f32
    %8 = vector.broadcast %cst_6 : f32 to vector<8x32xf32>
    %9 = arith.mulf %8, %5 : vector<8x32xf32>
    %10 = arith.select %7, %5, %9 : vector<8x32xi1>, vector<8x32xf32>
    %c0_7 = arith.constant 0 : index
    %c0_8 = arith.constant 0 : index
    %11 = vector.load %arg6[%c0_7, %c0_8] : memref<8x32xf32, #tpu.memory_space<vmem>>, vector<8x32xf32>
    tpu.vector_store %arg6[%c0_7, %c0_8], %10 {strides = array<i32>} : memref<8x32xf32, #tpu.memory_space<vmem>>, vector<8x32xf32>,
    return
  }
  func.func @transform_0(%arg0: i32, %arg1: i32, %arg2: i32) -> (i32, i32) {
    %c0_i32 = arith.constant 0 : i32
    return %arg0, %arg2 : i32, i32
  }
  func.func @transform_1(%arg0: i32, %arg1: i32, %arg2: i32) -> (i32, i32) {
    %c0_i32 = arith.constant 0 : i32
    return %arg2, %arg1 : i32, i32
  }
  func.func @transform_2(%arg0: i32, %arg1: i32, %arg2: i32) -> (i32, i32) {
    %c0_i32 = arith.constant 0 : i32
    %c0_i32_0 = arith.constant 0 : i32
    return %c0_i32, %arg1 : i32, i32
  }
  func.func @transform_3(%arg0: i32, %arg1: i32, %arg2: i32) -> (i32, i32) {
    %c0_i32 = arith.constant 0 : i32
    return %arg0, %arg1 : i32, i32
  }
}

</mosaic_0001>

<llo_original>
// kernel: tpu_custom_call.1
$region0: #{tpu_custom_call.1}
  #allocation0 [shape = 'u32[]', space=smem, size = 0x4, offset = 0x4, fixed_abs, tag = 'smem constant byte address 0x4 - core index']
  #allocation1 [shape = 'u32[144,128]{1,0:T(1,128)}', space=vmem, size = 0x12000, scoped, tag = 'internal scratch']
  %s0 = inlined_call_operand.hbm [shape: f32[16,32], index: 0, kind: input, shape index: {}]
  %s1 = inlined_call_operand.hbm [shape: f32[32,32], index: 1, kind: input, shape index: {}]
  %s2 = inlined_call_operand.vmem [shape: f32[1,32], index: 2, kind: input, shape index: {}]
  %s3 = inlined_call_operand.hbm [shape: f32[16,32], index: 3, kind: output, shape index: {}]
  %s4 = sld [smem:[#allocation0]]
  $region53: #{tpu_custom_call.1} parent=0
    _
  %s6 = ssub.s32 1, %s4
  %s7 = scalar_select 0, %s6, %s4
  $region1: #{tpu_custom_call.1} parent=0
    #allocation2 [shape = 'u8[8192]{0}', space=vmem, size = 0x2000, scoped, tag = 'input window, operand 0']
    #allocation3 [shape = 's32[2]{0}', space=sflag, size = 0x8, scoped, tag = 'scoped memory for tpu_custom_call.1']
    #allocation4 [shape = 's32[2]{0}', space=sflag, size = 0x8, scoped, tag = 'scoped memory for tpu_custom_call.1']
    #allocation5 [shape = 'u8[16384]{0}', space=vmem, size = 0x4000, scoped, tag = 'input window, operand 1, single buffered']
    #allocation6 [shape = 's32[1]{0}', space=sflag, size = 0x4, scoped, tag = 'scoped memory for tpu_custom_call.1']
    #allocation7 [shape = 'u8[8192]{0}', space=vmem, size = 0x2000, scoped, tag = 'output window, operand 0']
    %8 = vsyncpa [#allocation3], 0
    %s9 = scalar_lea.sflag [#allocation3], 1
    %10 = vsyncpa %s9, 0
    %11 = vsyncpa [#allocation6], 0
    %12 = vsyncpa [#allocation4], 0
    %s13 = scalar_lea.sflag [#allocation4], 1
    %14 = vsyncpa %s13, 0
    loop: start=0, step=1, limit=4
    $region2: #{tpu_custom_call.1} parent=1 // loop_pre_header
      _
    $region3: #{tpu_custom_call.1} parent=1 // loop_header
      %s16 = sphi 0, %s20
      %p17 = scmp.ge.s32.totalorder %s16, 4
      %s23 = sphi 0, %s42
      %s24 = sphi 0, %s38
      %s25 = sphi 0, %s34
      %s26 = sphi 0, %s23
      %s27 = sphi 0, %s24
      %s28 = sphi 0, %s25
      %s29 = sphi 0, %s26
      %s30 = sphi 0, %s27
      %s31 = sphi 0, %s28
      %s47 = sphi 0, %s49
      %s50 = sphi 0, %s47
      %s51 = sphi 0, %s50
      %s67 = sphi 0, %s51
      %s75 = sphi 0, %s77
      %s78 = sphi 0, %s75
      %s79 = sphi 0, %s78
      %s95 = sphi 0, %s79
      %s101 = sphi 0, %s103
      %s104 = sphi 0, %s101
      %s105 = sphi 0, %s104
      %s121 = sphi 0, %s105
      %s129 = sphi 0, %s131
      %s132 = sphi 0, %s129
      %s133 = sphi 0, %s132
      %s149 = sphi 0, %s133
    $region4: #{tpu_custom_call.1} parent=1 // loop_header_branch
      %19 = sbr.rel (%p17) target = $region8
    $region5: #{tpu_custom_call.1} parent=1 // loop_body
      %s21 = ssub.s32 %s16, 1
      %s22 = ssub.s32 %s16, 2
      %s32 = sadd.s32 1, %s25
      %p33 = scmp.ge.s32.totalorder %s32, 1
      %s34 = scalar_select %p33, 0, %s32
      %s35 = sadd.s32 1, %s24
      %s36 = scalar_select %p33, %s35, %s24
      %p37 = scmp.ge.s32.totalorder %s36, 1
      %s38 = scalar_select %p37, 0, %s36
      %s39 = sadd.s32 1, %s23
      %s40 = scalar_select %p37, %s39, %s23
      %p41 = scmp.ge.s32.totalorder %s40, 2
      %s42 = scalar_select %p41, 0, %s40
      %s43 = ssub.s32 %s23, %s42
      %s44 = ssub.s32 %s25, %s34
      %s45 = sor.u32 %s43, %s44
      %p46 = scmp.eq.s32.totalorder %s45, 0
      %s48 = sadd.s32 %s47, 1
      %s49 = scalar_select %p46, %s47, %s48
      %p52 = pneg %p46
      %p53 = scmp.eq.s32.totalorder %s16, 1
      %p54 = por %p52, %p53
      %p55 = scmp.ne.s32.totalorder %s47, %s50
      %p56 = scmp.eq.s32.totalorder %s16, 0
      %p57 = por %p55, %p56
      %p58 = scmp.ne.s32.totalorder %s47, %s50
      %p59 = scmp.eq.s32.totalorder %s21, 1
      %p60 = por %p58, %p59
      %p61 = scmp.ne.s32.totalorder %s50, %s51
      %p62 = scmp.eq.s32.totalorder %s21, 0
      %p63 = por %p61, %p62
      %p64 = scmp.ne.s32.totalorder %s50, %s51
      %p65 = scmp.eq.s32.totalorder %s22, 1
      %p66 = por %p64, %p65
      %p68 = scmp.ne.s32.totalorder %s51, %s67
      %p69 = scmp.eq.s32.totalorder %s22, 0
      %p70 = por %p68, %p69
      %s71 = ssub.s32 %s25, %s34
      %s72 = ssub.s32 %s24, %s38
      %s73 = sor.u32 %s71, %s72
      %p74 = scmp.eq.s32.totalorder %s73, 0
      %s76 = sadd.s32 %s75, 1
      %s77 = scalar_select %p74, %s75, %s76
      %p80 = pneg %p74
      %p81 = scmp.eq.s32.totalorder %s16, 1
      %p82 = por %p80, %p81
      %p83 = scmp.ne.s32.totalorder %s75, %s78
      %p84 = scmp.eq.s32.totalorder %s16, 0
      %p85 = por %p83, %p84
      %p86 = scmp.ne.s32.totalorder %s75, %s78
      %p87 = scmp.eq.s32.totalorder %s21, 1
      %p88 = por %p86, %p87
      %p89 = scmp.ne.s32.totalorder %s78, %s79
      %p90 = scmp.eq.s32.totalorder %s21, 0
      %p91 = por %p89, %p90
      %p92 = scmp.ne.s32.totalorder %s78, %s79
      %p93 = scmp.eq.s32.totalorder %s22, 1
      %p94 = por %p92, %p93
      %p96 = scmp.ne.s32.totalorder %s79, %s95
      %p97 = scmp.eq.s32.totalorder %s22, 0
      %p98 = por %p96, %p97
      %s99 = ssub.s32 %s24, %s38
      %p100 = scmp.eq.s32.totalorder %s99, 0
      %s102 = sadd.s32 %s101, 1
      %s103 = scalar_select %p100, %s101, %s102
      %p106 = pneg %p100
      %p107 = scmp.eq.s32.totalorder %s16, 1
      %p108 = por %p106, %p107
      %p109 = scmp.ne.s32.totalorder %s101, %s104
      %p110 = scmp.eq.s32.totalorder %s16, 0
      %p111 = por %p109, %p110
      %p112 = scmp.ne.s32.totalorder %s101, %s104
      %p113 = scmp.eq.s32.totalorder %s21, 1
      %p114 = por %p112, %p113
      %p115 = scmp.ne.s32.totalorder %s104, %s105
      %p116 = scmp.eq.s32.totalorder %s21, 0
      %p117 = por %p115, %p116
      %p118 = scmp.ne.s32.totalorder %s104, %s105
      %p119 = scmp.eq.s32.totalorder %s22, 1
      %p120 = por %p118, %p119
      %p122 = scmp.ne.s32.totalorder %s105, %s121
      %p123 = scmp.eq.s32.totalorder %s22, 0
      %p124 = por %p122, %p123
      %s125 = ssub.s32 %s23, %s42
      %s126 = ssub.s32 %s24, %s38
      %s127 = sor.u32 %s125, %s126
      %p128 = scmp.eq.s32.totalorder %s127, 0
      %s130 = sadd.s32 %s129, 1
      %s131 = scalar_select %p128, %s129, %s130
      %p134 = pneg %p128
      %p135 = scmp.eq.s32.totalorder %s16, 1
      %p136 = por %p134, %p135
      %p137 = scmp.ne.s32.totalorder %s129, %s132
      %p138 = scmp.eq.s32.totalorder %s16, 0
      %p139 = por %p137, %p138
      %p140 = scmp.ne.s32.totalorder %s129, %s132
      %p141 = scmp.eq.s32.totalorder %s21, 1
      %p142 = por %p140, %p141
      %p143 = scmp.ne.s32.totalorder %s132, %s133
      %p144 = scmp.eq.s32.totalorder %s21, 0
      %p145 = por %p143, %p144
      %p146 = scmp.ne.s32.totalorder %s132, %s133
      %p147 = scmp.eq.s32.totalorder %s22, 1
      %p148 = por %p146, %p147
      %p150 = scmp.ne.s32.totalorder %s133, %s149
      %p151 = scmp.eq.s32.totalorder %s22, 0
      %p152 = por %p150, %p151
      %p153 = scmp.le.s32.totalorder 1, %s16
      %p154 = scmp.lt.s32.totalorder %s16, 3
      %p155 = pnand %p153, %p154
      %p156 = pneg %p155
      // Predicated region
      $region9: #{tpu_custom_call.1} parent=5 // pred_check
        _
      $region10: #{tpu_custom_call.1} parent=5 // pred_check_branch
        %158 = sbr.rel (%p155) target = $region12
      $region11: #{tpu_custom_call.1} parent=5 // pred_region
        %s159 = ssub.s32 %s16, 1
        // Predicated region
        $region13: #{tpu_custom_call.1} parent=11 // pred_check
          %p160 = pneg %p91
        $region14: #{tpu_custom_call.1} parent=11 // pred_check_branch
          %162 = sbr.rel (%p160) target = $region16
        $region15: #{tpu_custom_call.1} parent=11 // pred_region
          %s163 = smul.u32 4, %s28
          %s165 = ssub.s32 512, 512
          %166 = vsyncadd [#allocation6], %s165
          %s167 = sadd.s32 %s27, %s163
          %s168 = smul.addr %s167, 128
          %s169 = scalar_lea.hbm %s1, %s168
          %s170 = sshll.u32 [#allocation5], 4
          %s171 = int_to_ptr.vmem [resolvable:$true] %s170
          %176 = dma.hbm_to_vmem [thread:$0]  %s169, 512, %s171, [#allocation6], 128, 128, 8
        $region16: #{tpu_custom_call.1} parent=11 // pred_fallthru
          _
        // Predicated region
        $region17: #{tpu_custom_call.1} parent=11 // pred_check
          %p177 = pneg %p117
        $region18: #{tpu_custom_call.1} parent=11 // pred_check_branch
          %179 = sbr.rel (%p177) target = $region20
        $region19: #{tpu_custom_call.1} parent=11 // pred_region
          %p180 = scmp.lt.s32.totalorder %s27, 0
          %s181 = scalar_select %p180, %s27, 0
          %s182 = scalar_lea.vmem %s2, %s181
        $region20: #{tpu_custom_call.1} parent=11 // pred_fallthru
          _
      $region12: #{tpu_custom_call.1} parent=5 // pred_fallthru
        _
      %p183 = scmp.lt.s32.totalorder %s16, 2
      // Predicated region
      $region21: #{tpu_custom_call.1} parent=5 // pred_check
        %p184 = pneg %p183
      $region22: #{tpu_custom_call.1} parent=5 // pred_check_branch
        %186 = sbr.rel (%p184) target = $region24
      $region23: #{tpu_custom_call.1} parent=5 // pred_region
        // Predicated region
        $region25: #{tpu_custom_call.1} parent=23 // pred_check
          %p187 = pneg %p57
        $region26: #{tpu_custom_call.1} parent=23 // pred_check_branch
          %189 = sbr.rel (%p187) target = $region28
        $region27: #{tpu_custom_call.1} parent=23 // pred_region
          %s190 = sand.u32 %s47, 1
          %s191 = scalar_lea.sflag [#allocation3], %s190
          %s192 = sand.u32 %s47, 1
          %s193 = smul.addr %s192, 8
          %s194 = scalar_lea.vmem [#allocation2], %s193
          %s196 = ssub.s32 128, 128
          %197 = vsyncadd %s191, %s196
          %s198 = sadd.s32 %s25, %s23
          %s199 = smul.addr %s198, 128
          %s200 = scalar_lea.hbm %s0, %s199
          %s202 = sshll.u32 %s194, 4
          %s203 = int_to_ptr.vmem [resolvable:$true] %s202
          %205 = dma.hbm_to_vmem [thread:$0]  %s200, 128, %s203, %s191
        $region28: #{tpu_custom_call.1} parent=23 // pred_fallthru
          _
      $region24: #{tpu_custom_call.1} parent=5 // pred_fallthru
        _
      %p206 = scmp.le.s32.totalorder 1, %s16
      %p207 = scmp.lt.s32.totalorder %s16, 3
      %p208 = pnand %p206, %p207
      %p209 = pneg %p208
      // Predicated region
      $region29: #{tpu_custom_call.1} parent=5 // pred_check
        _
      $region30: #{tpu_custom_call.1} parent=5 // pred_check_branch
        %211 = sbr.rel (%p208) target = $region32
      $region31: #{tpu_custom_call.1} parent=5 // pred_region
        %s212 = ssub.s32 %s16, 1
        %s213 = sand.u32 %s50, 1
        %s214 = scalar_lea.sflag [#allocation3], %s213
        %s215 = sand.u32 %s50, 1
        %s216 = smul.addr %s215, 8
        %s217 = scalar_lea.vmem [#allocation2], %s216
        // Predicated region
        $region33: #{tpu_custom_call.1} parent=31 // pred_check
          %p218 = pneg %p63
        $region34: #{tpu_custom_call.1} parent=31 // pred_check_branch
          %220 = sbr.rel (%p218) target = $region36
        $region35: #{tpu_custom_call.1} parent=31 // pred_region
          %221 = dma.done %s214, 128
        $region36: #{tpu_custom_call.1} parent=31 // pred_fallthru
          _
        // Predicated region
        $region37: #{tpu_custom_call.1} parent=31 // pred_check
          %p222 = pneg %p91
        $region38: #{tpu_custom_call.1} parent=31 // pred_check_branch
          %224 = sbr.rel (%p222) target = $region40
        $region39: #{tpu_custom_call.1} parent=31 // pred_region
          %225 = dma.done [#allocation6], 512
        $region40: #{tpu_custom_call.1} parent=31 // pred_fallthru
          _
        %s226 = sand.u32 %s50, 1
        %s227 = scalar_lea.sflag [#allocation3], %s226
        %s228 = sand.u32 %s50, 1
        %s229 = smul.addr %s228, 8
        %s230 = scalar_lea.vmem [#allocation2], %s229
        %p231 = pneg %p63
        %p232 = pneg %p60
        %p233 = pneg %p91
        %p234 = pneg %p88
        %p235 = scmp.lt.s32.totalorder %s27, 0
        %s236 = scalar_select %p235, %s27, 0
        %s237 = scalar_lea.vmem %s2, %s236
        %p238 = pneg %p117
        %p239 = pneg %p114
        %p240 = pneg %p145
        %p241 = pneg %p142
        %s242 = sand.u32 %s132, 1
        %s243 = scalar_lea.sflag [#allocation4], %s242
        %s244 = sand.u32 %s132, 1
        %s245 = smul.addr %s244, 8
        %s246 = scalar_lea.vmem [#allocation7], %s245
        %s247 = smul.u32 4, %s28
        %p248 = scmp.lt.s32.totalorder %s27, 0
        %s249 = scalar_select %p248, %s27, 0
        %s250 = scalar_lea.vmem %s2, %s249
        %v251 = vld [vmem:[%s217] sm:$0xff]
        %v252 = vld [vmem:[#allocation5] sm:$0xff]
        %v253 = vld [vmem:[#allocation5 + $0x8] sm:$0xff]
        %v254 = vld [vmem:[#allocation5 + $0x10] sm:$0xff]
        %v255 = vld [vmem:[#allocation5 + $0x18] sm:$0xff]
        %v256 = vld [vmem:[%s250] sm:$0x1]
        %v258 = vlaneseq
        %v259 = vshrl.u32 %v258, 7
        %v260 = vsub.s32 0, %v259
        %v261 = vrot.slane %v256, %v260
        %vm263 = vcmask 261120
        %v265 = vsel %vm263, %v251, 0
        %267 = vmatprep.subr.mxu0 0.0
        %268 = vmatpush1.msra.mxu0 0.0
        %269 = vmatprep.subr.mxu0 0.0
        %270 = vmatpush1.msra.mxu0 0.0
        %271 = vmatprep.subr.mxu0 0.0
        %272 = vmatpush1.msra.mxu0 0.0
        %273 = vmatprep.subr.mxu0 0.0
        %274 = vmatpush1.msra.mxu0 0.0
        %275 = vmatprep.subr.mxu0 0.0
        %276 = vmatpush1.msra.mxu0 0.0
        %277 = vmatprep.subr.mxu0 0.0
        %278 = vmatpush1.msra.mxu0 0.0
        %279 = vmatprep.subr.mxu0 0.0
        %280 = vmatpush1.msra.mxu0 0.0
        %281 = vmatprep.subr.mxu0 0.0
        %282 = vmatpush1.msra.mxu0 0.0
        %283 = vmatprep.subr.mxu0 0.0
        %284 = vmatpush1.msra.mxu0 0.0
        %285 = vmatprep.subr.mxu0 0.0
        %286 = vmatpush1.msra.mxu0 0.0
        %287 = vmatprep.subr.mxu0 0.0
        %288 = vmatpush1.msra.mxu0 0.0
        %289 = vmatprep.subr.mxu0 0.0
        %290 = vmatpush1.msra.mxu0 0.0
        %291 = vmatprep.subr.mxu0 0.0
        %292 = vmatpush1.msra.mxu0 %v255
        %293 = vmatprep.subr.mxu0 0.0
        %294 = vmatpush1.msra.mxu0 %v254
        %295 = vmatprep.subr.mxu0 0.0
        %296 = vmatpush1.msra.mxu0 %v253
        %297 = vmatprep.subr.mxu0 0.0
        %298 = vmatpush1.msra.mxu0 %v252
        %299 = vmatprep.subr.mxu0 0.0
        %300 = vmatpush2.msra.mxu0 0.0
        %301 = vmatprep.subr.mxu0 0.0
        %302 = vmatpush2.msra.mxu0 0.0
        %303 = vmatprep.subr.mxu0 0.0
        %304 = vmatpush2.msra.mxu0 0.0
        %305 = vmatprep.subr.mxu0 0.0
        %306 = vmatpush2.msra.mxu0 0.0
        %307 = vmatprep.subr.mxu0 0.0
        %308 = vmatpush2.msra.mxu0 0.0
        %309 = vmatprep.subr.mxu0 0.0
        %310 = vmatpush2.msra.mxu0 0.0
        %311 = vmatprep.subr.mxu0 0.0
        %312 = vmatpush2.msra.mxu0 0.0
        %313 = vmatprep.subr.mxu0 0.0
        %314 = vmatpush2.msra.mxu0 0.0
        %315 = vmatprep.subr.mxu0 0.0
        %316 = vmatpush2.msra.mxu0 0.0
        %317 = vmatprep.subr.mxu0 0.0
        %318 = vmatpush2.msra.mxu0 0.0
        %319 = vmatprep.subr.mxu0 0.0
        %320 = vmatpush2.msra.mxu0 0.0
        %321 = vmatprep.subr.mxu0 0.0
        %322 = vmatpush2.msra.mxu0 0.0
        %323 = vmatprep.subr.mxu0 0.0
        %324 = vmatpush2.msra.mxu0 0.0
        %325 = vmatprep.subr.mxu0 0.0
        %326 = vmatpush2.msra.mxu0 0.0
        %327 = vmatprep.subr.mxu0 0.0
        %328 = vmatpush2.msra.mxu0 0.0
        %329 = vmatprep.subr.mxu0 0.0
        %330 = vmatpush2.msra.mxu0 0.0
        %331 = vmatprep.mubr.f32.mxu0 0.0
        %332 = vmatmul.mubr.f32.gmra.mxu0 %v265
        %v333 = vpop.f32.mrf.mxu0
        %v334 = vadd.f32 %v261, %v333
        %v335 = vpop.f32.mrf.mxu0
        %336 = vdwg.mxu0
        %vm337 = vcmp.ge.f32.partialorder %v334, 0.0
        %v338 = vmul.f32 %v334, 0.01
        %v339 = vsel %vm337, %v334, %v338
        %340 = vst.msk [vmem:[%s246] sm:$0xff] %vm263, %v339
        %s341 = sand.u32 %s132, 1
        %s342 = scalar_lea.sflag [#allocation4], %s341
        %s343 = sand.u32 %s132, 1
        %s344 = smul.addr %s343, 8
        %s345 = scalar_lea.vmem [#allocation7], %s344
        // Predicated region
        $region41: #{tpu_custom_call.1} parent=31 // pred_check
          %p346 = pneg %p142
        $region42: #{tpu_custom_call.1} parent=31 // pred_check_branch
          %348 = sbr.rel (%p346) target = $region44
        $region43: #{tpu_custom_call.1} parent=31 // pred_region
          %s350 = ssub.s32 128, 128
          %351 = vsyncadd %s342, %s350
          %s352 = sadd.s32 %s27, %s26
          %s353 = smul.addr %s352, 128
          %s354 = scalar_lea.hbm %s3, %s353
          %s356 = sshll.u32 %s345, 4
          %s357 = int_to_ptr.vmem [resolvable:$true] %s356
          %359 = dma.vmem_to_hbm [thread:$0]  %s357, 128, %s354, %s342
        $region44: #{tpu_custom_call.1} parent=31 // pred_fallthru
          _
      $region32: #{tpu_custom_call.1} parent=5 // pred_fallthru
        _
      %p360 = scmp.le.s32.totalorder 2, %s16
      // Predicated region
      $region45: #{tpu_custom_call.1} parent=5 // pred_check
        %p361 = pneg %p360
      $region46: #{tpu_custom_call.1} parent=5 // pred_check_branch
        %363 = sbr.rel (%p361) target = $region48
      $region47: #{tpu_custom_call.1} parent=5 // pred_region
        %s364 = ssub.s32 %s16, 2
        // Predicated region
        $region49: #{tpu_custom_call.1} parent=47 // pred_check
          %p365 = pneg %p148
        $region50: #{tpu_custom_call.1} parent=47 // pred_check_branch
          %367 = sbr.rel (%p365) target = $region52
        $region51: #{tpu_custom_call.1} parent=47 // pred_region
          %s368 = sand.u32 %s133, 1
          %s369 = scalar_lea.sflag [#allocation4], %s368
          %s370 = sand.u32 %s133, 1
          %s371 = smul.addr %s370, 8
          %s372 = scalar_lea.vmem [#allocation7], %s371
          %373 = dma.done %s369, 128
        $region52: #{tpu_custom_call.1} parent=47 // pred_fallthru
          _
      $region48: #{tpu_custom_call.1} parent=5 // pred_fallthru
        _
    $region6: #{tpu_custom_call.1} parent=1 // loop_footer
      %s20 = sadd.s32 1, %s16
    $region7: #{tpu_custom_call.1} parent=1 // loop_footer_branch
      %15 = sbr.rel target = $region3
    $region8: #{tpu_custom_call.1} parent=1 // loop_exit
      _
    %374 = vsyncpa [#allocation3], 1
    %s375 = scalar_lea.sflag [#allocation3], 1
    %376 = vsyncpa %s375, 1
    %377 = vsyncpa [#allocation6], 1
    %378 = vsyncpa [#allocation4], 1
    %s379 = scalar_lea.sflag [#allocation4], 1
    %380 = vsyncpa %s379, 1

</llo_original>
